<compile_context>
chip_gen: v6e
topology: v6e:2x2x1
jax: 0.10.0
libtpu: 0.0.40
codegen_flags: <defaults>
</compile_context>

<pallas_src>
import functools

import jax
import jax.numpy as jnp
import numpy as np
from jax.experimental import pallas as pl
from jax.experimental.pallas import tpu as pltpu


# ---------------------------------------------------------------- helpers ----

def _round_up(x, m):
    return (x + m - 1) // m * m


def _gelu_exact(x):
    # PyTorch nn.GELU() default = exact erf-based GELU.
    return 0.5 * x * (1.0 + jax.lax.erf(x * (1.0 / np.sqrt(2.0))))


# consts-slab row indices (one full 128-lane row per vector; lane placement chosen so the kernel
# never needs masked lane sub-slices -- see pack_operands()).
_R_LN1W, _R_LN1B = 0, 1
_R_B1, _R_B2 = 2, 3
_R_HALF_L, _R_SHIFT, _R_OFFSET, _R_HALF_W, _R_INV_HALF_W, _R_BASIS = 4, 5, 6, 7, 8, 9
_R_B3, _R_B4 = 10, 11
_R_LN2W, _R_LN2B = 12, 13
_N_CONST_ROWS = 14


# ------------------------------------------------------------------ kernel ---

def _residual_fsq_kernel(x_ref, s_ref, out_ref, *, D, F, LANES, W1, W2, W3, W4):
    eps_ln = 1e-5
    N = x_ref.shape[0]
    lane = jax.lax.broadcasted_iota(jnp.int32, (N, LANES), 1)

    x = x_ref[...]                                   # (N, LANES), payload at lanes [D, 2D)

    # ---- LayerNorm 1 (zero-padded lanes drop out of the sums exactly; rsqrt -> EUP) ----
    mean1 = jnp.sum(x, axis=-1, keepdims=True) / D
    in_mask = jnp.logical_and(lane >= D, lane < 2 * D)
    xc1 = jnp.where(in_mask, x - mean1, 0.0)
    var1 = jnp.sum(xc1 * xc1, axis=-1, keepdims=True) / D
    xn = (xc1 * jax.lax.rsqrt(var1 + eps_ln)
          * s_ref[_R_LN1W:_R_LN1W + 1, :] + s_ref[_R_LN1B:_R_LN1B + 1, :])
    # xn payload sits at lanes [D, 2D)  (== the `residual` output lanes), exactly 0 elsewhere.

    # ---- in_proj: Linear(D->H) -> GELU -> Linear(H->F)  (both full-width MXU passes) ----
    h = jnp.dot(xn, s_ref[W1:W1 + LANES, :],
                preferred_element_type=jnp.float32) + s_ref[_R_B1:_R_B1 + 1, :]
    h = _gelu_exact(h)                               # payload at lanes [0, H)
    z = jnp.dot(h, s_ref[W2:W2 + LANES, :],
                preferred_element_type=jnp.float32) + s_ref[_R_B2:_R_B2 + 1, :]
    # z payload at lanes [2D, 2D+F)  (== the `points` output lanes).

    # ---- FSQ quantize (bound -> round -> normalize), full width; matches ParamfreeFSQ ----
    bounded = (jnp.tanh(z + s_ref[_R_SHIFT:_R_SHIFT + 1, :])
               * s_ref[_R_HALF_L:_R_HALF_L + 1, :] - s_ref[_R_OFFSET:_R_OFFSET + 1, :])
    q = jnp.round(bounded)                           # forward of round_ste
    codes = q * s_ref[_R_INV_HALF_W:_R_INV_HALF_W + 1, :]     # normalized codes at [2D, 2D+F)

    # code -> index: multiply + lane reduce (XLU); exact integer-valued f32 (< codebook_size)
    idx_f = jnp.sum((q + s_ref[_R_HALF_W:_R_HALF_W + 1, :]) * s_ref[_R_BASIS:_R_BASIS + 1, :],
                    axis=-1, keepdims=True)

    # ---- out_proj Linear(F->D): F independent rank-1 VPU products, pairwise tree-sum ----
    prods = [codes[:, 2 * D + f:2 * D + f + 1] * s_ref[W3 + f:W3 + f + 1, :] for f in range(F)]
    while len(prods) > 1:
        prods = ([prods[i] + prods[i + 1] for i in range(0, len(prods) - 1, 2)]
                 + ([prods[-1]] if len(prods) % 2 else []))
    o = s_ref[_R_B3:_R_B3 + 1, :] + prods[0]         # payload at lanes [0, D)
    o = _gelu_exact(o)
    o2 = jnp.dot(o, s_ref[W4:W4 + LANES, :],
                 preferred_element_type=jnp.float32) + s_ref[_R_B4:_R_B4 + 1, :]
    # w4/b4 are duplicated host-side into output lanes [0,D) and [D,2D) -> o2 holds two
    # identical copies of the out_proj result (and zeros beyond 2D).

    # ---- LayerNorm 2 + Tanh over the duplicated 2D-wide payload (math identical to width D) ----
    mean2 = jnp.sum(o2, axis=-1, keepdims=True) / (2 * D)
    out_mask = lane < 2 * D
    xc2 = jnp.where(out_mask, o2 - mean2, 0.0)
    var2 = jnp.sum(xc2 * xc2, axis=-1, keepdims=True) / (2 * D)
    act = jnp.tanh(xc2 * jax.lax.rsqrt(var2 + eps_ln)
                   * s_ref[_R_LN2W:_R_LN2W + 1, :] + s_ref[_R_LN2B:_R_LN2B + 1, :])
    # act carries the activated output at BOTH [0,D) and [D,2D); zeros elsewhere.

    # ---- single full-width packed store:  act | ln1(x)-act | codes | index | 0-pad ----
    sign = jnp.where(lane < D, -1.0, 1.0)
    out = (xn - act) * sign + codes + jnp.where(lane == 2 * D + F, idx_f, 0.0)
    out_ref[...] = out


# ------------------------------------------------------------- host wrapper ---

@functools.partial(jax.jit,
                   static_argnames=("D", "F", "LANES", "W1", "W2", "W3", "W4", "return_code"))
def _forward_impl(x, slab, *, D, F, LANES, W1, W2, W3, W4, return_code):
    B, S, _ = x.shape
    N = B * S
    # lane-dense input: payload parked at lanes [D, 2D) == the output lanes of `residual`
    x_pad = jnp.pad(x.reshape(N, D).astype(jnp.float32), ((0, 0), (D, LANES - 2 * D)))

    flops = int(3 * 2 * N * LANES * LANES + 48 * N * LANES)
    transc = int(5 * N * LANES)
    bytes_acc = int(4 * (x_pad.size + slab.size + N * LANES))

    packed = pl.pallas_call(
        functools.partial(_residual_fsq_kernel, D=D, F=F, LANES=LANES,
                          W1=W1, W2=W2, W3=W3, W4=W4),
        out_shape=jax.ShapeDtypeStruct((N, LANES), jnp.float32),
        in_specs=[pl.BlockSpec(memory_space=pltpu.MemorySpace.VMEM)] * 2,
        out_specs=pl.BlockSpec(memory_space=pltpu.MemorySpace.VMEM),
        cost_estimate=pl.CostEstimate(flops=flops, transcendentals=transc,
                                      bytes_accessed=bytes_acc),
    )(x_pad, slab)

    result = {
        "quantized": packed[:, 0:D].reshape(B, S, D),
        "residual": packed[:, D:2 * D].reshape(B, S, D),
        "points": packed[:, 2 * D:2 * D + F].reshape(B, S, F),
    }
    if return_code:
        # indices were stored as exact small-integer-valued f32, so a plain cast recovers them
        # (torch: indices (B, S) -> unsqueeze(1) -> (B, 1, S)).
        result["indices"] = packed[:, 2 * D + F].astype(jnp.int32).reshape(B, S)[:, None, :]
    return result


def residual_fsq_forward(x, slab, layout, fsq_dim, return_code=True):
    """x: (B, S, dim) float32.  Matches ResidualFSQ.forward."""
    _, _, D = x.shape
    return _forward_impl(x, slab, D=D, F=fsq_dim, LANES=layout["lanes"],
                         W1=layout["w1"], W2=layout["w2"], W3=layout["w3"], W4=layout["w4"],
                         return_code=return_code)


# ------------------------------------------------------------- param packing ---

def make_params(key, dim, fsq_levels, dtype=jnp.float32):
    """Deterministic synthetic parameters matching the PyTorch module shapes."""
    scale = 2  # activation is Tanh
    hidden = scale * dim
    fsq_dim = len(fsq_levels)
    ks = jax.random.split(key, 4)

    def lin(k, fan_in, fan_out):
        kw, kb = jax.random.split(k)
        bound = 1.0 / np.sqrt(fan_in)
        w = jax.random.uniform(kw, (fan_in, fan_out), dtype, -bound, bound)
        b = jax.random.uniform(kb, (1, fan_out), dtype, -bound, bound)
        return w, b

    w1, b1 = lin(ks[0], dim, hidden)      # in_proj[0]
    w2, b2 = lin(ks[1], hidden, fsq_dim)  # in_proj[2]
    w3, b3 = lin(ks[2], fsq_dim, dim)     # out_proj[0]
    w4, b4 = lin(ks[3], dim, dim)         # out_proj[2]

    params = dict(
        ln1w=jnp.ones((1, dim), dtype), ln1b=jnp.zeros((1, dim), dtype),
        ln2w=jnp.ones((1, dim), dtype), ln2b=jnp.zeros((1, dim), dtype),
        w1=w1, b1=b1, w2=w2, b2=b2, w3=w3, b3=b3, w4=w4, b4=b4,
    )

    # FSQ (ParamfreeFSQ) per-channel constants -- matches the torch source exactly:
    # half_l = (L-1)*(1-eps)/2, offset = 0.5 for even levels, shift = tan(offset/half_l),
    # half_width = L // 2, basis = cumprod([1] + levels[:-1]).
    eps = 1e-3
    levels = np.asarray(fsq_levels, dtype=np.float32)
    half_l = (levels - 1.0) * (1.0 - eps) / 2.0
    offset = np.where(levels % 2 == 0, 0.5, 0.0).astype(np.float32)
    shift = np.tan(offset / half_l).astype(np.float32)
    half_w = np.floor(levels / 2.0).astype(np.float32)
    basis = np.cumprod(np.concatenate([[1.0], levels[:-1]])).astype(np.float32)

    fsq_consts = dict(
        half_l=jnp.asarray(half_l)[None, :], offset=jnp.asarray(offset)[None, :],
        shift=jnp.asarray(shift)[None, :], half_w=jnp.asarray(half_w)[None, :],
        inv_half_w=jnp.asarray(1.0 / half_w)[None, :],
        basis=jnp.asarray(basis)[None, :],
    )
    return params, fsq_consts


def pack_operands(params, fsq_consts, dim, fsq_levels):
    """Pack every weight / constant into ONE lane-dense slab (a single HBM->VMEM DMA).

    Lane placement doubles as output routing: each intermediate is computed directly in the
    lanes where it is either consumed by the next matmul or stored in the packed output, so
    the kernel needs no masked lane sub-slices, rotates or concatenates.
    """
    hidden = 2 * dim
    F = len(fsq_levels)
    lanes = _round_up(max(2 * dim + F + 1, hidden, 128), 128)
    assert hidden <= lanes and 2 * dim + F + 1 <= lanes

    crows = _round_up(_N_CONST_ROWS, 8)
    w1_base = crows                 # `lanes` rows; w1 at rows [dim, 2*dim), cols [0, hidden)
    w2_base = w1_base + lanes       # `lanes` rows; w2 at rows [0, hidden), cols [2D, 2D+F)
    w4_base = w2_base + lanes       # `lanes` rows; w4 at rows [0, dim), cols [0,D) AND [D,2D)
    w3_base = w4_base + lanes       # F rows; cols [0, dim)
    rows = _round_up(w3_base + F, 8)

    slab = np.zeros((rows, lanes), np.float32)

    def put(r, lo, v):
        v = np.asarray(v, np.float32).reshape(-1)
        slab[r, lo:lo + v.shape[0]] = v

    put(_R_LN1W, dim, params["ln1w"]); put(_R_LN1B, dim, params["ln1b"])
    put(_R_B1, 0, params["b1"])
    put(_R_B2, 2 * dim, params["b2"])
    put(_R_HALF_L, 2 * dim, fsq_consts["half_l"])
    put(_R_SHIFT, 2 * dim, fsq_consts["shift"])
    put(_R_OFFSET, 2 * dim, fsq_consts["offset"])
    put(_R_HALF_W, 2 * dim, fsq_consts["half_w"])
    put(_R_INV_HALF_W, 2 * dim, fsq_consts["inv_half_w"])
    put(_R_BASIS, 2 * dim, fsq_consts["basis"])
    put(_R_B3, 0, params["b3"])
    put(_R_B4, 0, params["b4"]); put(_R_B4, dim, params["b4"])
    put(_R_LN2W, 0, params["ln2w"]); put(_R_LN2W, dim, params["ln2w"])
    put(_R_LN2B, 0, params["ln2b"]); put(_R_LN2B, dim, params["ln2b"])

    slab[w1_base + dim:w1_base + 2 * dim, 0:hidden] = np.asarray(params["w1"])
    slab[w2_base:w2_base + hidden, 2 * dim:2 * dim + F] = np.asarray(params["w2"])
    slab[w4_base:w4_base + dim, 0:dim] = np.asarray(params["w4"])
    slab[w4_base:w4_base + dim, dim:2 * dim] = np.asarray(params["w4"])
    slab[w3_base:w3_base + F, 0:dim] = np.asarray(params["w3"])

    layout = dict(lanes=lanes, w1=w1_base, w2=w2_base, w3=w3_base, w4=w4_base)
    return jnp.asarray(slab), layout


# -------------------------------------------------------- pure-JAX reference ---

def _reference(x, params, fsq_consts):
    eps_ln = 1e-5
    B, S, D = x.shape
    x2 = x.reshape(B * S, D)
    m = x2.mean(-1, keepdims=True)
    v = ((x2 - m) ** 2).mean(-1, keepdims=True)
    xn = (x2 - m) / jnp.sqrt(v + eps_ln) * params["ln1w"] + params["ln1b"]
    h = _gelu_exact(xn @ params["w1"] + params["b1"])
    z = h @ params["w2"] + params["b2"]
    bounded = jnp.tanh(z + fsq_consts["shift"]) * fsq_consts["half_l"] - fsq_consts["offset"]
    codes = jnp.round(bounded) / fsq_consts["half_w"]
    zh = codes * fsq_consts["half_w"] + fsq_consts["half_w"]
    idx = jnp.sum(zh * fsq_consts["basis"], -1).astype(jnp.int32)
    o = _gelu_exact(codes @ params["w3"] + params["b3"])
    o = o @ params["w4"] + params["b4"]
    m2 = o.mean(-1, keepdims=True)
    v2 = ((o - m2) ** 2).mean(-1, keepdims=True)
    on = (o - m2) / jnp.sqrt(v2 + eps_ln) * params["ln2w"] + params["ln2b"]
    act = jnp.tanh(on)
    F = codes.shape[-1]
    return {
        "quantized": act.reshape(B, S, D),
        "residual": (xn - act).reshape(B, S, D),
        "points": codes.reshape(B, S, F),
        "indices": idx.reshape(B, S)[:, None, :],
    }


# --------------------------------------------------------------------- main ---

if __name__ == "__main__":
    B, S, DIM = 2, 1, 32              # module expects (batch, 1, dim)
    FSQ_LEVELS = [8, 5, 5, 5]         # fsq_dim = 4, codebook size = 1000

    key = jax.random.PRNGKey(0)
    kx, kp = jax.random.split(key)
    x = jax.random.normal(kx, (B, S, DIM), jnp.float32)
    params, fsq_consts = make_params(kp, DIM, FSQ_LEVELS)
    slab, layout = pack_operands(params, fsq_consts, DIM, FSQ_LEVELS)

    out = residual_fsq_forward(x, slab, layout, len(FSQ_LEVELS), return_code=True)
    out = jax.tree_util.tree_map(jax.block_until_ready, out)

    ref = _reference(x, params, fsq_consts)
    for k in ("quantized", "residual", "points"):
        np.testing.assert_allclose(np.asarray(out[k]), np.asarray(ref[k]),
                                   rtol=1e-5, atol=1e-5)
    np.testing.assert_array_equal(np.asarray(out["indices"]),
                                  np.asarray(ref["indices"]))

    assert out["quantized"].shape == (B, S, DIM)
    assert out["residual"].shape == (B, S, DIM)
    assert out["points"].shape == (B, S, len(FSQ_LEVELS))
    assert out["indices"].shape == (B, 1, S)

    print("KERNEL_OK")
</pallas_src>

<mosaic_0001>
module attributes {stable_mosaic.version = 11 : i64} {
  func.func @_residual_fsq_kernel(%arg0: memref<2x128xf32, #tpu.memory_space<vmem>>, %arg1: memref<408x128xf32, #tpu.memory_space<vmem>>, %arg2: memref<2x128xf32, #tpu.memory_space<vmem>>) attributes {dimension_semantics = [], scalar_prefetch = 0 : i64, scratch_operands = 0 : i64, tpu.core_type = #tpu.core_type<tc>} {
    %0 = tpu.iota {dimensions = array<i32: 1>} : vector<2x128xi32>
    %c0 = arith.constant 0 : index
    %c0_0 = arith.constant 0 : index
    %1 = vector.load %arg0[%c0, %c0_0] : memref<2x128xf32, #tpu.memory_space<vmem>>, vector<2x128xf32>
    %cst = arith.constant dense<0.000000e+00> : vector<2xf32>
    %2 = vector.multi_reduction <add>, %1, %cst [1] : vector<2x128xf32> to vector<2xf32>
    %3 = vector.shape_cast %2 : vector<2xf32> to vector<2x1xf32>
    %cst_1 = arith.constant 3.200000e+01 : f32
    %4 = vector.broadcast %cst_1 : f32 to vector<2x1xf32>
    %5 = arith.divf %3, %4 : vector<2x1xf32>
    %c32_i32 = arith.constant 32 : i32
    %6 = vector.broadcast %c32_i32 : i32 to vector<2x128xi32>
    %7 = arith.cmpi sge, %0, %6 : vector<2x128xi32>
    %c64_i32 = arith.constant 64 : i32
    %8 = vector.broadcast %c64_i32 : i32 to vector<2x128xi32>
    %9 = arith.cmpi slt, %0, %8 : vector<2x128xi32>
    %10 = arith.andi %7, %9 : vector<2x128xi1>
    %11 = vector.broadcast %5 : vector<2x1xf32> to vector<2x128xf32>
    %12 = arith.subf %1, %11 : vector<2x128xf32>
    %cst_2 = arith.constant 0.000000e+00 : f32
    %13 = vector.broadcast %cst_2 : f32 to vector<2x128xf32>
    %14 = arith.select %10, %12, %13 : vector<2x128xi1>, vector<2x128xf32>
    %15 = arith.mulf %14, %14 : vector<2x128xf32>
    %cst_3 = arith.constant dense<0.000000e+00> : vector<2xf32>
    %16 = vector.multi_reduction <add>, %15, %cst_3 [1] : vector<2x128xf32> to vector<2xf32>
    %17 = vector.shape_cast %16 : vector<2xf32> to vector<2x1xf32>
    %cst_4 = arith.constant 3.200000e+01 : f32
    %18 = vector.broadcast %cst_4 : f32 to vector<2x1xf32>
    %19 = arith.divf %17, %18 : vector<2x1xf32>
    %cst_5 = arith.constant 9.99999974E-6 : f32
    %20 = vector.broadcast %cst_5 : f32 to vector<2x1xf32>
    %21 = arith.addf %19, %20 : vector<2x1xf32>
    %22 = math.rsqrt %21 : vector<2x1xf32>
    %23 = vector.broadcast %22 : vector<2x1xf32> to vector<2x128xf32>
    %24 = arith.mulf %14, %23 : vector<2x128xf32>
    %c0_6 = arith.constant 0 : index
    %c0_7 = arith.constant 0 : index
    %25 = vector.load %arg1[%c0_6, %c0_7] : memref<408x128xf32, #tpu.memory_space<vmem>>, vector<1x128xf32>
    %26 = vector.broadcast %25 : vector<1x128xf32> to vector<2x128xf32>
    %27 = arith.mulf %24, %26 : vector<2x128xf32>
    %c1 = arith.constant 1 : index
    %c0_8 = arith.constant 0 : index
    %28 = vector.load %arg1[%c1, %c0_8] : memref<408x128xf32, #tpu.memory_space<vmem>>, vector<1x128xf32>
    %29 = vector.broadcast %28 : vector<1x128xf32> to vector<2x128xf32>
    %30 = arith.addf %27, %29 : vector<2x128xf32>
    %c16 = arith.constant 16 : index
    %c0_9 = arith.constant 0 : index
    %31 = vector.load %arg1[%c16, %c0_9] : memref<408x128xf32, #tpu.memory_space<vmem>>, vector<128x128xf32>
    %cst_10 = arith.constant dense<0.000000e+00> : vector<2x128xf32>
    %32 = tpu.matmul %30, %31, %cst_10 {dimension_numbers = #tpu.dot_dimension_numbers<[1], [0], [0], [1], [0, 0, 1, 1], [], []>} : vector<2x128xf32>, vector<128x128xf32>, vector<2x128xf32> -> vector<2x128xf32>
    %c2 = arith.constant 2 : index
    %c0_11 = arith.constant 0 : index
    %33 = vector.load %arg1[%c2, %c0_11] : memref<408x128xf32, #tpu.memory_space<vmem>>, vector<1x128xf32>
    %34 = vector.broadcast %33 : vector<1x128xf32> to vector<2x128xf32>
    %35 = arith.addf %32, %34 : vector<2x128xf32>
    %cst_12 = arith.constant 5.000000e-01 : f32
    %36 = vector.broadcast %cst_12 : f32 to vector<2x128xf32>
    %37 = arith.mulf %36, %35 : vector<2x128xf32>
    %cst_13 = arith.constant 0.707106769 : f32
    %38 = vector.broadcast %cst_13 : f32 to vector<2x128xf32>
    %39 = arith.mulf %35, %38 : vector<2x128xf32>
    %40 = math.erf %39 : vector<2x128xf32>
    %cst_14 = arith.constant 1.000000e+00 : f32
    %41 = vector.broadcast %cst_14 : f32 to vector<2x128xf32>
    %42 = arith.addf %41, %40 : vector<2x128xf32>
    %43 = arith.mulf %37, %42 : vector<2x128xf32>
    %c144 = arith.constant 144 : index
    %c0_15 = arith.constant 0 : index
    %44 = vector.load %arg1[%c144, %c0_15] : memref<408x128xf32, #tpu.memory_space<vmem>>, vector<128x128xf32>
    %cst_16 = arith.constant dense<0.000000e+00> : vector<2x128xf32>
    %45 = tpu.matmul %43, %44, %cst_16 {dimension_numbers = #tpu.dot_dimension_numbers<[1], [0], [0], [1], [0, 0, 1, 1], [], []>} : vector<2x128xf32>, vector<128x128xf32>, vector<2x128xf32> -> vector<2x128xf32>
    %c3 = arith.constant 3 : index
    %c0_17 = arith.constant 0 : index
    %46 = vector.load %arg1[%c3, %c0_17] : memref<408x128xf32, #tpu.memory_space<vmem>>, vector<1x128xf32>
    %47 = vector.broadcast %46 : vector<1x128xf32> to vector<2x128xf32>
    %48 = arith.addf %45, %47 : vector<2x128xf32>
    %c5 = arith.constant 5 : index
    %c0_18 = arith.constant 0 : index
    %49 = vector.load %arg1[%c5, %c0_18] : memref<408x128xf32, #tpu.memory_space<vmem>>, vector<1x128xf32>
    %50 = vector.broadcast %49 : vector<1x128xf32> to vector<2x128xf32>
    %51 = arith.addf %48, %50 : vector<2x128xf32>
    %52 = math.tanh %51 : vector<2x128xf32>
    %c4 = arith.constant 4 : index
    %c0_19 = arith.constant 0 : index
    %53 = vector.load %arg1[%c4, %c0_19] : memref<408x128xf32, #tpu.memory_space<vmem>>, vector<1x128xf32>
    %54 = vector.broadcast %53 : vector<1x128xf32> to vector<2x128xf32>
    %55 = arith.mulf %52, %54 : vector<2x128xf32>
    %c6 = arith.constant 6 : index
    %c0_20 = arith.constant 0 : index
    %56 = vector.load %arg1[%c6, %c0_20] : memref<408x128xf32, #tpu.memory_space<vmem>>, vector<1x128xf32>
    %57 = vector.broadcast %56 : vector<1x128xf32> to vector<2x128xf32>
    %58 = arith.subf %55, %57 : vector<2x128xf32>
    %59 = math.roundeven %58 : vector<2x128xf32>
    %c8 = arith.constant 8 : index
    %c0_21 = arith.constant 0 : index
    %60 = vector.load %arg1[%c8, %c0_21] : memref<408x128xf32, #tpu.memory_space<vmem>>, vector<1x128xf32>
    %61 = vector.broadcast %60 : vector<1x128xf32> to vector<2x128xf32>
    %62 = arith.mulf %59, %61 : vector<2x128xf32>
    %c7 = arith.constant 7 : index
    %c0_22 = arith.constant 0 : index
    %63 = vector.load %arg1[%c7, %c0_22] : memref<408x128xf32, #tpu.memory_space<vmem>>, vector<1x128xf32>
    %64 = vector.broadcast %63 : vector<1x128xf32> to vector<2x128xf32>
    %65 = arith.addf %59, %64 : vector<2x128xf32>
    %c9 = arith.constant 9 : index
    %c0_23 = arith.constant 0 : index
    %66 = vector.load %arg1[%c9, %c0_23] : memref<408x128xf32, #tpu.memory_space<vmem>>, vector<1x128xf32>
    %67 = vector.broadcast %66 : vector<1x128xf32> to vector<2x128xf32>
    %68 = arith.mulf %65, %67 : vector<2x128xf32>
    %cst_24 = arith.constant dense<0.000000e+00> : vector<2xf32>
    %69 = vector.multi_reduction <add>, %68, %cst_24 [1] : vector<2x128xf32> to vector<2xf32>
    %70 = vector.shape_cast %69 : vector<2xf32> to vector<2x1xf32>
    %71 = vector.extract_strided_slice %62 {offsets = [0, 64], sizes = [2, 1], strides = [1, 1]} : vector<2x128xf32> to vector<2x1xf32>
    %c400 = arith.constant 400 : index
    %c0_25 = arith.constant 0 : index
    %72 = vector.load %arg1[%c400, %c0_25] : memref<408x128xf32, #tpu.memory_space<vmem>>, vector<1x128xf32>
    %73 = vector.broadcast %71 : vector<2x1xf32> to vector<2x128xf32>
    %74 = vector.broadcast %72 : vector<1x128xf32> to vector<2x128xf32>
    %75 = arith.mulf %73, %74 : vector<2x128xf32>
    %76 = vector.extract_strided_slice %62 {offsets = [0, 65], sizes = [2, 1], strides = [1, 1]} : vector<2x128xf32> to vector<2x1xf32>
    %c401 = arith.constant 401 : index
    %c0_26 = arith.constant 0 : index
    %77 = vector.load %arg1[%c401, %c0_26] : memref<408x128xf32, #tpu.memory_space<vmem>>, vector<1x128xf32>
    %78 = vector.broadcast %76 : vector<2x1xf32> to vector<2x128xf32>
    %79 = vector.broadcast %77 : vector<1x128xf32> to vector<2x128xf32>
    %80 = arith.mulf %78, %79 : vector<2x128xf32>
    %81 = vector.extract_strided_slice %62 {offsets = [0, 66], sizes = [2, 1], strides = [1, 1]} : vector<2x128xf32> to vector<2x1xf32>
    %c402 = arith.constant 402 : index
    %c0_27 = arith.constant 0 : index
    %82 = vector.load %arg1[%c402, %c0_27] : memref<408x128xf32, #tpu.memory_space<vmem>>, vector<1x128xf32>
    %83 = vector.broadcast %81 : vector<2x1xf32> to vector<2x128xf32>
    %84 = vector.broadcast %82 : vector<1x128xf32> to vector<2x128xf32>
    %85 = arith.mulf %83, %84 : vector<2x128xf32>
    %86 = vector.extract_strided_slice %62 {offsets = [0, 67], sizes = [2, 1], strides = [1, 1]} : vector<2x128xf32> to vector<2x1xf32>
    %c403 = arith.constant 403 : index
    %c0_28 = arith.constant 0 : index
    %87 = vector.load %arg1[%c403, %c0_28] : memref<408x128xf32, #tpu.memory_space<vmem>>, vector<1x128xf32>
    %88 = vector.broadcast %86 : vector<2x1xf32> to vector<2x128xf32>
    %89 = vector.broadcast %87 : vector<1x128xf32> to vector<2x128xf32>
    %90 = arith.mulf %88, %89 : vector<2x128xf32>
    %91 = arith.addf %75, %80 : vector<2x128xf32>
    %92 = arith.addf %85, %90 : vector<2x128xf32>
    %93 = arith.addf %91, %92 : vector<2x128xf32>
    %c10 = arith.constant 10 : index
    %c0_29 = arith.constant 0 : index
    %94 = vector.load %arg1[%c10, %c0_29] : memref<408x128xf32, #tpu.memory_space<vmem>>, vector<1x128xf32>
    %95 = vector.broadcast %94 : vector<1x128xf32> to vector<2x128xf32>
    %96 = arith.addf %95, %93 : vector<2x128xf32>
    %cst_30 = arith.constant 5.000000e-01 : f32
    %97 = vector.broadcast %cst_30 : f32 to vector<2x128xf32>
    %98 = arith.mulf %97, %96 : vector<2x128xf32>
    %cst_31 = arith.constant 0.707106769 : f32
    %99 = vector.broadcast %cst_31 : f32 to vector<2x128xf32>
    %100 = arith.mulf %96, %99 : vector<2x128xf32>
    %101 = math.erf %100 : vector<2x128xf32>
    %cst_32 = arith.constant 1.000000e+00 : f32
    %102 = vector.broadcast %cst_32 : f32 to vector<2x128xf32>
    %103 = arith.addf %102, %101 : vector<2x128xf32>
    %104 = arith.mulf %98, %103 : vector<2x128xf32>
    %c272 = arith.constant 272 : index
    %c0_33 = arith.constant 0 : index
    %105 = vector.load %arg1[%c272, %c0_33] : memref<408x128xf32, #tpu.memory_space<vmem>>, vector<128x128xf32>
    %cst_34 = arith.constant dense<0.000000e+00> : vector<2x128xf32>
    %106 = tpu.matmul %104, %105, %cst_34 {dimension_numbers = #tpu.dot_dimension_numbers<[1], [0], [0], [1], [0, 0, 1, 1], [], []>} : vector<2x128xf32>, vector<128x128xf32>, vector<2x128xf32> -> vector<2x128xf32>
    %c11 = arith.constant 11 : index
    %c0_35 = arith.constant 0 : index
    %107 = vector.load %arg1[%c11, %c0_35] : memref<408x128xf32, #tpu.memory_space<vmem>>, vector<1x128xf32>
    %108 = vector.broadcast %107 : vector<1x128xf32> to vector<2x128xf32>
    %109 = arith.addf %106, %108 : vector<2x128xf32>
    %cst_36 = arith.constant dense<0.000000e+00> : vector<2xf32>
    %110 = vector.multi_reduction <add>, %109, %cst_36 [1] : vector<2x128xf32> to vector<2xf32>
    %111 = vector.shape_cast %110 : vector<2xf32> to vector<2x1xf32>
    %cst_37 = arith.constant 6.400000e+01 : f32
    %112 = vector.broadcast %cst_37 : f32 to vector<2x1xf32>
    %113 = arith.divf %111, %112 : vector<2x1xf32>
    %c64_i32_38 = arith.constant 64 : i32
    %114 = vector.broadcast %c64_i32_38 : i32 to vector<2x128xi32>
    %115 = arith.cmpi slt, %0, %114 : vector<2x128xi32>
    %116 = vector.broadcast %113 : vector<2x1xf32> to vector<2x128xf32>
    %117 = arith.subf %109, %116 : vector<2x128xf32>
    %cst_39 = arith.constant 0.000000e+00 : f32
    %118 = vector.broadcast %cst_39 : f32 to vector<2x128xf32>
    %119 = arith.select %115, %117, %118 : vector<2x128xi1>, vector<2x128xf32>
    %120 = arith.mulf %119, %119 : vector<2x128xf32>
    %cst_40 = arith.constant dense<0.000000e+00> : vector<2xf32>
    %121 = vector.multi_reduction <add>, %120, %cst_40 [1] : vector<2x128xf32> to vector<2xf32>
    %122 = vector.shape_cast %121 : vector<2xf32> to vector<2x1xf32>
    %cst_41 = arith.constant 6.400000e+01 : f32
    %123 = vector.broadcast %cst_41 : f32 to vector<2x1xf32>
    %124 = arith.divf %122, %123 : vector<2x1xf32>
    %cst_42 = arith.constant 9.99999974E-6 : f32
    %125 = vector.broadcast %cst_42 : f32 to vector<2x1xf32>
    %126 = arith.addf %124, %125 : vector<2x1xf32>
    %127 = math.rsqrt %126 : vector<2x1xf32>
    %128 = vector.broadcast %127 : vector<2x1xf32> to vector<2x128xf32>
    %129 = arith.mulf %119, %128 : vector<2x128xf32>
    %c12 = arith.constant 12 : index
    %c0_43 = arith.constant 0 : index
    %130 = vector.load %arg1[%c12, %c0_43] : memref<408x128xf32, #tpu.memory_space<vmem>>, vector<1x128xf32>
    %131 = vector.broadcast %130 : vector<1x128xf32> to vector<2x128xf32>
    %132 = arith.mulf %129, %131 : vector<2x128xf32>
    %c13 = arith.constant 13 : index
    %c0_44 = arith.constant 0 : index
    %133 = vector.load %arg1[%c13, %c0_44] : memref<408x128xf32, #tpu.memory_space<vmem>>, vector<1x128xf32>
    %134 = vector.broadcast %133 : vector<1x128xf32> to vector<2x128xf32>
    %135 = arith.addf %132, %134 : vector<2x128xf32>
    %136 = math.tanh %135 : vector<2x128xf32>
    %c32_i32_45 = arith.constant 32 : i32
    %137 = vector.broadcast %c32_i32_45 : i32 to vector<2x128xi32>
    %138 = arith.cmpi slt, %0, %137 : vector<2x128xi32>
    %cst_46 = arith.constant -1.000000e+00 : f32
    %cst_47 = arith.constant 1.000000e+00 : f32
    %139 = vector.broadcast %cst_46 : f32 to vector<2x128xf32>
    %140 = vector.broadcast %cst_47 : f32 to vector<2x128xf32>
    %141 = arith.select %138, %139, %140 : vector<2x128xi1>, vector<2x128xf32>
    %142 = arith.subf %30, %136 : vector<2x128xf32>
    %143 = arith.mulf %142, %141 : vector<2x128xf32>
    %144 = arith.addf %143, %62 : vector<2x128xf32>
    %c68_i32 = arith.constant 68 : i32
    %145 = vector.broadcast %c68_i32 : i32 to vector<2x128xi32>
    %146 = arith.cmpi eq, %0, %145 : vector<2x128xi32>
    %cst_48 = arith.constant 0.000000e+00 : f32
    %147 = vector.shape_cast %70 : vector<2x1xf32> to vector<2x1xf32>
    %148 = vector.broadcast %147 : vector<2x1xf32> to vector<2x128xf32>
    %149 = vector.broadcast %cst_48 : f32 to vector<2x128xf32>
    %150 = arith.select %146, %148, %149 : vector<2x128xi1>, vector<2x128xf32>
    %151 = arith.addf %144, %150 : vector<2x128xf32>
    %c0_49 = arith.constant 0 : index
    %c0_50 = arith.constant 0 : index
    %152 = vector.load %arg2[%c0_49, %c0_50] : memref<2x128xf32, #tpu.memory_space<vmem>>, vector<2x128xf32>
    tpu.vector_store %arg2[%c0_49, %c0_50], %151 {strides = array<i32>} : memref<2x128xf32, #tpu.memory_space<vmem>>, vector<2x128xf32>,
    return
  }
}

</mosaic_0001>

<llo_original>
// kernel: _forward_impl.1
$region0: #{_forward_impl.1}
  #allocation0 [shape = 'u32[]', space=smem, size = 0x4, offset = 0x4, fixed_abs, tag = 'smem constant byte address 0x4 - core index']
  #allocation1 [shape = 'u32[144,128]{1,0:T(1,128)}', space=vmem, size = 0x12000, scoped, tag = 'internal scratch']
  %s0 = inlined_call_operand.vmem [shape: f32[2,128], index: 0, kind: input, shape index: {}]
  %s1 = inlined_call_operand.hbm [shape: f32[408,128], index: 1, kind: input, shape index: {}]
  %s2 = inlined_call_operand.vmem [shape: f32[2,128], index: 2, kind: output, shape index: {}]
  %s3 = sld [smem:[#allocation0]]
  $region22: #{_forward_impl.1} parent=0
    _
  %s5 = ssub.s32 1, %s3
  %s6 = scalar_select 0, %s5, %s3
  $region1: #{_forward_impl.1} parent=0
    #allocation2 [shape = 'u8[208896]{0}', space=vmem, size = 0x33000, scoped, tag = 'input window, operand 1, single buffered']
    #allocation3 [shape = 's32[1]{0}', space=sflag, size = 0x4, scoped, tag = 'scoped memory for _forward_impl.1']
    %7 = vsyncpa [#allocation3], 0
    // Predicated region
    $region2: #{_forward_impl.1} parent=1 // pred_check
      _
    $region3: #{_forward_impl.1} parent=1 // pred_check_branch
      %9 = sbr.rel (0) target = $region5
    $region4: #{_forward_impl.1} parent=1 // pred_region
      _
    $region5: #{_forward_impl.1} parent=1 // pred_fallthru
      _
    // Predicated region
    $region6: #{_forward_impl.1} parent=1 // pred_check
      _
    $region7: #{_forward_impl.1} parent=1 // pred_check_branch
      %11 = sbr.rel (0) target = $region9
    $region8: #{_forward_impl.1} parent=1 // pred_region
      %s13 = ssub.s32 6528, 6528
      %14 = vsyncadd [#allocation3], %s13
      %s15 = sshll.u32 [#allocation2], 4
      %s16 = int_to_ptr.vmem [resolvable:$true] %s15
      %21 = dma.hbm_to_vmem [thread:$0]  %s1, 6528, %s16, [#allocation3], 128, 128, 8
    $region9: #{_forward_impl.1} parent=1 // pred_fallthru
      _
    // Predicated region
    $region10: #{_forward_impl.1} parent=1 // pred_check
      _
    $region11: #{_forward_impl.1} parent=1 // pred_check_branch
      %23 = sbr.rel (0) target = $region13
    $region12: #{_forward_impl.1} parent=1 // pred_region
      %24 = dma.done [#allocation3], 6528
    $region13: #{_forward_impl.1} parent=1 // pred_fallthru
      _
    %v25 = vlaneseq
    %v26 = vand.u32 %v25, 127
    %v27 = vld [vmem:[%s0] sm:$0x3]
    %vm28 = vcmask 1041408
    %v29 = vsel %vm28, %v27, 0.0
    %30 = vadd.xlane.f32.xlu0 %v29
    %v31 = vpop.xlane.xlu0 %30
    %v32 = vrcp.pop 32.0
    %v33 = vmul.f32 %v31, %v32
    %vm34 = vcmp.ge.s32.totalorder %v26, 32
    %vm35 = vcmp.lt.s32.totalorder %v26, 64
    %vm36 = vmand %vm34, %vm35
    %v37 = vsub.f32 %v27, %v33
    %v38 = vsel %vm36, %v37, 0.0
    %v39 = vmul.f32 %v38, %v38
    %v40 = vsel %vm28, %v39, 0.0
    %41 = vadd.xlane.f32.xlu0 %v40
    %v42 = vpop.xlane.xlu0 %41
    %v43 = vmul.f32 %v42, %v32
    %v44 = vadd.f32 %v43, 1e-05
    %v45 = vrsqrt.pop %v44
    %v46 = vmul.f32 %v38, %v45
    %v47 = vld [vmem:[#allocation2] sm:$0x1]
    %v48 = vlaneseq
    %v49 = vshrl.u32 %v48, 7
    %v50 = vsub.s32 0, %v49
    %v51 = vrot.slane %v47, %v50
    %v52 = vmul.f32 %v46, %v51
    %v53 = vld [vmem:[#allocation2 + $0x1] sm:$0x1]
    %v54 = vlaneseq
    %v55 = vshrl.u32 %v54, 7
    %v56 = vsub.s32 0, %v55
    %v57 = vrot.slane %v53, %v56
    %v58 = vadd.f32 %v52, %v57
    %v59 = vld [vmem:[#allocation2 + $0x10] sm:$0xff]
    %v60 = vld [vmem:[#allocation2 + $0x18] sm:$0xff]
    %v61 = vld [vmem:[#allocation2 + $0x20] sm:$0xff]
    %v62 = vld [vmem:[#allocation2 + $0x28] sm:$0xff]
    %v63 = vld [vmem:[#allocation2 + $0x30] sm:$0xff]
    %v64 = vld [vmem:[#allocation2 + $0x38] sm:$0xff]
    %v65 = vld [vmem:[#allocation2 + $0x40] sm:$0xff]
    %v66 = vld [vmem:[#allocation2 + $0x48] sm:$0xff]
    %v67 = vld [vmem:[#allocation2 + $0x50] sm:$0xff]
    %v68 = vld [vmem:[#allocation2 + $0x58] sm:$0xff]
    %v69 = vld [vmem:[#allocation2 + $0x60] sm:$0xff]
    %v70 = vld [vmem:[#allocation2 + $0x68] sm:$0xff]
    %v71 = vld [vmem:[#allocation2 + $0x70] sm:$0xff]
    %v72 = vld [vmem:[#allocation2 + $0x78] sm:$0xff]
    %v73 = vld [vmem:[#allocation2 + $0x80] sm:$0xff]
    %v74 = vld [vmem:[#allocation2 + $0x88] sm:$0xff]
    %v75 = vld [vmem:[#allocation2 + $0x2] sm:$0x1]
    %v76 = vlaneseq
    %v77 = vshrl.u32 %v76, 7
    %v78 = vsub.s32 0, %v77
    %v79 = vrot.slane %v75, %v78
    %80 = vmatprep.subr.mxu0 0.0
    %81 = vmatpush1.msra.mxu0 %v74
    %82 = vmatprep.subr.mxu0 0.0
    %83 = vmatpush1.msra.mxu0 %v73
    %84 = vmatprep.subr.mxu0 0.0
    %85 = vmatpush1.msra.mxu0 %v72
    %86 = vmatprep.subr.mxu0 0.0
    %87 = vmatpush1.msra.mxu0 %v71
    %88 = vmatprep.subr.mxu0 0.0
    %89 = vmatpush1.msra.mxu0 %v70
    %90 = vmatprep.subr.mxu0 0.0
    %91 = vmatpush1.msra.mxu0 %v69
    %92 = vmatprep.subr.mxu0 0.0
    %93 = vmatpush1.msra.mxu0 %v68
    %94 = vmatprep.subr.mxu0 0.0
    %95 = vmatpush1.msra.mxu0 %v67
    %96 = vmatprep.subr.mxu0 0.0
    %97 = vmatpush1.msra.mxu0 %v66
    %98 = vmatprep.subr.mxu0 0.0
    %99 = vmatpush1.msra.mxu0 %v65
    %100 = vmatprep.subr.mxu0 0.0
    %101 = vmatpush1.msra.mxu0 %v64
    %102 = vmatprep.subr.mxu0 0.0
    %103 = vmatpush1.msra.mxu0 %v63
    %104 = vmatprep.subr.mxu0 0.0
    %105 = vmatpush1.msra.mxu0 %v62
    %106 = vmatprep.subr.mxu0 0.0
    %107 = vmatpush1.msra.mxu0 %v61
    %108 = vmatprep.subr.mxu0 0.0
    %109 = vmatpush1.msra.mxu0 %v60
    %110 = vmatprep.subr.mxu0 0.0
    %111 = vmatpush1.msra.mxu0 %v59
    %112 = vmatprep.subr.mxu0 0.0
    %113 = vmatpush2.msra.mxu0 0.0
    %114 = vmatprep.subr.mxu0 0.0
    %115 = vmatpush2.msra.mxu0 0.0
    %116 = vmatprep.subr.mxu0 0.0
    %117 = vmatpush2.msra.mxu0 0.0
    %118 = vmatprep.subr.mxu0 0.0
    %119 = vmatpush2.msra.mxu0 0.0
    %120 = vmatprep.subr.mxu0 0.0
    %121 = vmatpush2.msra.mxu0 0.0
    %122 = vmatprep.subr.mxu0 0.0
    %123 = vmatpush2.msra.mxu0 0.0
    %124 = vmatprep.subr.mxu0 0.0
    %125 = vmatpush2.msra.mxu0 0.0
    %126 = vmatprep.subr.mxu0 0.0
    %127 = vmatpush2.msra.mxu0 0.0
    %128 = vmatprep.subr.mxu0 0.0
    %129 = vmatpush2.msra.mxu0 0.0
    %130 = vmatprep.subr.mxu0 0.0
    %131 = vmatpush2.msra.mxu0 0.0
    %132 = vmatprep.subr.mxu0 0.0
    %133 = vmatpush2.msra.mxu0 0.0
    %134 = vmatprep.subr.mxu0 0.0
    %135 = vmatpush2.msra.mxu0 0.0
    %136 = vmatprep.subr.mxu0 0.0
    %137 = vmatpush2.msra.mxu0 0.0
    %138 = vmatprep.subr.mxu0 0.0
    %139 = vmatpush2.msra.mxu0 0.0
    %140 = vmatprep.subr.mxu0 0.0
    %141 = vmatpush2.msra.mxu0 0.0
    %142 = vmatprep.subr.mxu0 0.0
    %143 = vmatpush2.msra.mxu0 0.0
    %144 = vmatprep.mubr.f32.mxu0 0.0
    %145 = vmatmul.mubr.f32.gmra.mxu0 %v58
    %v146 = vpop.f32.mrf.mxu0
    %v147 = vadd.f32 %v79, %v146
    %v148 = vpop.f32.mrf.mxu0
    %149 = vdwg.mxu0
    %v150 = vmul.f32 %v147, 0.5
    %v151 = vmul.f32 %v147, 0.70710677
    %v152 = verf.f32.pop %v151
    %v153 = vadd.f32 %v152, 1.0
    %v154 = vmul.f32 %v150, %v153
    %v155 = vld [vmem:[#allocation2 + $0x90] sm:$0xff]
    %v156 = vld [vmem:[#allocation2 + $0x98] sm:$0xff]
    %v157 = vld [vmem:[#allocation2 + $0xa0] sm:$0xff]
    %v158 = vld [vmem:[#allocation2 + $0xa8] sm:$0xff]
    %v159 = vld [vmem:[#allocation2 + $0xb0] sm:$0xff]
    %v160 = vld [vmem:[#allocation2 + $0xb8] sm:$0xff]
    %v161 = vld [vmem:[#allocation2 + $0xc0] sm:$0xff]
    %v162 = vld [vmem:[#allocation2 + $0xc8] sm:$0xff]
    %v163 = vld [vmem:[#allocation2 + $0xd0] sm:$0xff]
    %v164 = vld [vmem:[#allocation2 + $0xd8] sm:$0xff]
    %v165 = vld [vmem:[#allocation2 + $0xe0] sm:$0xff]
    %v166 = vld [vmem:[#allocation2 + $0xe8] sm:$0xff]
    %v167 = vld [vmem:[#allocation2 + $0xf0] sm:$0xff]
    %v168 = vld [vmem:[#allocation2 + $0xf8] sm:$0xff]
    %v169 = vld [vmem:[#allocation2 + $0x100] sm:$0xff]
    %v170 = vld [vmem:[#allocation2 + $0x108] sm:$0xff]
    %v171 = vld [vmem:[#allocation2 + $0x3] sm:$0x1]
    %v172 = vlaneseq
    %v173 = vshrl.u32 %v172, 7
    %v174 = vsub.s32 0, %v173
    %v175 = vrot.slane %v171, %v174
    %176 = vmatprep.subr.mxu0 0.0
    %177 = vmatpush1.msra.mxu0 %v170
    %178 = vmatprep.subr.mxu0 0.0
    %179 = vmatpush1.msra.mxu0 %v169
    %180 = vmatprep.subr.mxu0 0.0
    %181 = vmatpush1.msra.mxu0 %v168
    %182 = vmatprep.subr.mxu0 0.0
    %183 = vmatpush1.msra.mxu0 %v167
    %184 = vmatprep.subr.mxu0 0.0
    %185 = vmatpush1.msra.mxu0 %v166
    %186 = vmatprep.subr.mxu0 0.0
    %187 = vmatpush1.msra.mxu0 %v165
    %188 = vmatprep.subr.mxu0 0.0
    %189 = vmatpush1.msra.mxu0 %v164
    %190 = vmatprep.subr.mxu0 0.0
    %191 = vmatpush1.msra.mxu0 %v163
    %192 = vmatprep.subr.mxu0 0.0
    %193 = vmatpush1.msra.mxu0 %v162
    %194 = vmatprep.subr.mxu0 0.0
    %195 = vmatpush1.msra.mxu0 %v161
    %196 = vmatprep.subr.mxu0 0.0
    %197 = vmatpush1.msra.mxu0 %v160
    %198 = vmatprep.subr.mxu0 0.0
    %199 = vmatpush1.msra.mxu0 %v159
    %200 = vmatprep.subr.mxu0 0.0
    %201 = vmatpush1.msra.mxu0 %v158
    %202 = vmatprep.subr.mxu0 0.0
    %203 = vmatpush1.msra.mxu0 %v157
    %204 = vmatprep.subr.mxu0 0.0
    %205 = vmatpush1.msra.mxu0 %v156
    %206 = vmatprep.subr.mxu0 0.0
    %207 = vmatpush1.msra.mxu0 %v155
    %208 = vmatprep.subr.mxu0 0.0
    %209 = vmatpush2.msra.mxu0 0.0
    %210 = vmatprep.subr.mxu0 0.0
    %211 = vmatpush2.msra.mxu0 0.0
    %212 = vmatprep.subr.mxu0 0.0
    %213 = vmatpush2.msra.mxu0 0.0
    %214 = vmatprep.subr.mxu0 0.0
    %215 = vmatpush2.msra.mxu0 0.0
    %216 = vmatprep.subr.mxu0 0.0
    %217 = vmatpush2.msra.mxu0 0.0
    %218 = vmatprep.subr.mxu0 0.0
    %219 = vmatpush2.msra.mxu0 0.0
    %220 = vmatprep.subr.mxu0 0.0
    %221 = vmatpush2.msra.mxu0 0.0
    %222 = vmatprep.subr.mxu0 0.0
    %223 = vmatpush2.msra.mxu0 0.0
    %224 = vmatprep.subr.mxu0 0.0
    %225 = vmatpush2.msra.mxu0 0.0
    %226 = vmatprep.subr.mxu0 0.0
    %227 = vmatpush2.msra.mxu0 0.0
    %228 = vmatprep.subr.mxu0 0.0
    %229 = vmatpush2.msra.mxu0 0.0
    %230 = vmatprep.subr.mxu0 0.0
    %231 = vmatpush2.msra.mxu0 0.0
    %232 = vmatprep.subr.mxu0 0.0
    %233 = vmatpush2.msra.mxu0 0.0
    %234 = vmatprep.subr.mxu0 0.0
    %235 = vmatpush2.msra.mxu0 0.0
    %236 = vmatprep.subr.mxu0 0.0
    %237 = vmatpush2.msra.mxu0 0.0
    %238 = vmatprep.subr.mxu0 0.0
    %239 = vmatpush2.msra.mxu0 0.0
    %240 = vmatprep.mubr.f32.mxu0 0.0
    %241 = vmatmul.mubr.f32.gmra.mxu0 %v154
    %v242 = vpop.f32.mrf.mxu0
    %v243 = vadd.f32 %v175, %v242
    %v244 = vpop.f32.mrf.mxu0
    %245 = vdwg.mxu0
    %v246 = vld [vmem:[#allocation2 + $0x5] sm:$0x1]
    %v247 = vlaneseq
    %v248 = vshrl.u32 %v247, 7
    %v249 = vsub.s32 0, %v248
    %v250 = vrot.slane %v246, %v249
    %v251 = vadd.f32 %v243, %v250
    %v252 = vtanh.pop %v251
    %v253 = vld [vmem:[#allocation2 + $0x4] sm:$0x1]
    %v254 = vlaneseq
    %v255 = vshrl.u32 %v254, 7
    %v256 = vsub.s32 0, %v255
    %v257 = vrot.slane %v253, %v256
    %v258 = vmul.f32 %v252, %v257
    %v259 = vld [vmem:[#allocation2 + $0x6] sm:$0x1]
    %v260 = vlaneseq
    %v261 = vshrl.u32 %v260, 7
    %v262 = vsub.s32 0, %v261
    %v263 = vrot.slane %v259, %v262
    %v264 = vsub.f32 %v258, %v263
    %v265 = vround.ne.pseudo %v264
    %v266 = vld [vmem:[#allocation2 + $0x8] sm:$0x1]
    %v267 = vlaneseq
    %v268 = vshrl.u32 %v267, 7
    %v269 = vsub.s32 0, %v268
    %v270 = vrot.slane %v266, %v269
    %v271 = vmul.f32 %v265, %v270
    %v272 = vld [vmem:[#allocation2 + $0x7] sm:$0x1]
    %v273 = vlaneseq
    %v274 = vshrl.u32 %v273, 7
    %v275 = vsub.s32 0, %v274
    %v276 = vrot.slane %v272, %v275
    %v277 = vadd.f32 %v265, %v276
    %v278 = vld [vmem:[#allocation2 + $0x9] sm:$0x1]
    %v279 = vlaneseq
    %v280 = vshrl.u32 %v279, 7
    %v281 = vsub.s32 0, %v280
    %v282 = vrot.slane %v278, %v281
    %v283 = vmul.f32 %v277, %v282
    %v284 = vsel %vm28, %v283, 0.0
    %285 = vadd.xlane.f32.xlu0 %v284
    %v286 = vpop.xlane.xlu0 %285
    %v287 = vld [vmem:[#allocation2 + $0x190] sm:$0x1]
    %289 = vset.pattern.permute.xlu0 64
    %290 = vperm.xlu0 %289, %v271
    %v291 = vpop.permute.xlu0 %290
    %v293 = vlaneseq
    %v294 = vshrl.u32 %v293, 7
    %v295 = vsub.s32 0, %v294
    %v296 = vrot.slane %v287, %v295
    %v297 = vmul.f32 %v291, %v296
    %v298 = vld [vmem:[#allocation2 + $0x191] sm:$0x1]
    %299 = vset.pattern.permute.xlu0 65
    %300 = vperm.xlu0 %299, %v271
    %v301 = vpop.permute.xlu0 %300
    %v303 = vlaneseq
    %v304 = vshrl.u32 %v303, 7
    %v305 = vsub.s32 0, %v304
    %v306 = vrot.slane %v298, %v305
    %v307 = vmul.f32 %v301, %v306
    %v308 = vld [vmem:[#allocation2 + $0x192] sm:$0x1]
    %309 = vset.pattern.permute.xlu0 66
    %310 = vperm.xlu0 %309, %v271
    %v311 = vpop.permute.xlu0 %310
    %v313 = vlaneseq
    %v314 = vshrl.u32 %v313, 7
    %v315 = vsub.s32 0, %v314
    %v316 = vrot.slane %v308, %v315
    %v317 = vmul.f32 %v311, %v316
    %v318 = vld [vmem:[#allocation2 + $0x193] sm:$0x1]
    %319 = vset.pattern.permute.xlu0 67
    %320 = vperm.xlu0 %319, %v271
    %v321 = vpop.permute.xlu0 %320
    %v323 = vlaneseq
    %v324 = vshrl.u32 %v323, 7
    %v325 = vsub.s32 0, %v324
    %v326 = vrot.slane %v318, %v325
    %v327 = vmul.f32 %v321, %v326
    %v328 = vadd.f32 %v297, %v307
    %v329 = vadd.f32 %v317, %v327
    %v330 = vadd.f32 %v328, %v329
    %v331 = vld [vmem:[#allocation2 + $0xa] sm:$0x1]
    %v332 = vlaneseq
    %v333 = vshrl.u32 %v332, 7
    %v334 = vsub.s32 0, %v333
    %v335 = vrot.slane %v331, %v334
    %v336 = vadd.f32 %v335, %v330
    %v337 = vmul.f32 %v336, 0.5
    %v338 = vmul.f32 %v336, 0.70710677
    %v339 = verf.f32.pop %v338
    %v340 = vadd.f32 %v339, 1.0
    %v341 = vmul.f32 %v337, %v340
    %v342 = vld [vmem:[#allocation2 + $0x110] sm:$0xff]
    %v343 = vld [vmem:[#allocation2 + $0x118] sm:$0xff]
    %v344 = vld [vmem:[#allocation2 + $0x120] sm:$0xff]
    %v345 = vld [vmem:[#allocation2 + $0x128] sm:$0xff]
    %v346 = vld [vmem:[#allocation2 + $0x130] sm:$0xff]
    %v347 = vld [vmem:[#allocation2 + $0x138] sm:$0xff]
    %v348 = vld [vmem:[#allocation2 + $0x140] sm:$0xff]
    %v349 = vld [vmem:[#allocation2 + $0x148] sm:$0xff]
    %v350 = vld [vmem:[#allocation2 + $0x150] sm:$0xff]
    %v351 = vld [vmem:[#allocation2 + $0x158] sm:$0xff]
    %v352 = vld [vmem:[#allocation2 + $0x160] sm:$0xff]
    %v353 = vld [vmem:[#allocation2 + $0x168] sm:$0xff]
    %v354 = vld [vmem:[#allocation2 + $0x170] sm:$0xff]
    %v355 = vld [vmem:[#allocation2 + $0x178] sm:$0xff]
    %v356 = vld [vmem:[#allocation2 + $0x180] sm:$0xff]
    %v357 = vld [vmem:[#allocation2 + $0x188] sm:$0xff]
    %v358 = vld [vmem:[#allocation2 + $0xb] sm:$0x1]
    %v359 = vlaneseq
    %v360 = vshrl.u32 %v359, 7
    %v361 = vsub.s32 0, %v360
    %v362 = vrot.slane %v358, %v361
    %363 = vmatprep.subr.mxu0 0.0
    %364 = vmatpush1.msra.mxu0 %v357
    %365 = vmatprep.subr.mxu0 0.0
    %366 = vmatpush1.msra.mxu0 %v356
    %367 = vmatprep.subr.mxu0 0.0
    %368 = vmatpush1.msra.mxu0 %v355
    %369 = vmatprep.subr.mxu0 0.0
    %370 = vmatpush1.msra.mxu0 %v354
    %371 = vmatprep.subr.mxu0 0.0
    %372 = vmatpush1.msra.mxu0 %v353
    %373 = vmatprep.subr.mxu0 0.0
    %374 = vmatpush1.msra.mxu0 %v352
    %375 = vmatprep.subr.mxu0 0.0
    %376 = vmatpush1.msra.mxu0 %v351
    %377 = vmatprep.subr.mxu0 0.0
    %378 = vmatpush1.msra.mxu0 %v350
    %379 = vmatprep.subr.mxu0 0.0
    %380 = vmatpush1.msra.mxu0 %v349
    %381 = vmatprep.subr.mxu0 0.0
    %382 = vmatpush1.msra.mxu0 %v348
    %383 = vmatprep.subr.mxu0 0.0
    %384 = vmatpush1.msra.mxu0 %v347
    %385 = vmatprep.subr.mxu0 0.0
    %386 = vmatpush1.msra.mxu0 %v346
    %387 = vmatprep.subr.mxu0 0.0
    %388 = vmatpush1.msra.mxu0 %v345
    %389 = vmatprep.subr.mxu0 0.0
    %390 = vmatpush1.msra.mxu0 %v344
    %391 = vmatprep.subr.mxu0 0.0
    %392 = vmatpush1.msra.mxu0 %v343
    %393 = vmatprep.subr.mxu0 0.0
    %394 = vmatpush1.msra.mxu0 %v342
    %395 = vmatprep.subr.mxu0 0.0
    %396 = vmatpush2.msra.mxu0 0.0
    %397 = vmatprep.subr.mxu0 0.0
    %398 = vmatpush2.msra.mxu0 0.0
    %399 = vmatprep.subr.mxu0 0.0
    %400 = vmatpush2.msra.mxu0 0.0
    %401 = vmatprep.subr.mxu0 0.0
    %402 = vmatpush2.msra.mxu0 0.0
    %403 = vmatprep.subr.mxu0 0.0
    %404 = vmatpush2.msra.mxu0 0.0
    %405 = vmatprep.subr.mxu0 0.0
    %406 = vmatpush2.msra.mxu0 0.0
    %407 = vmatprep.subr.mxu0 0.0
    %408 = vmatpush2.msra.mxu0 0.0
    %409 = vmatprep.subr.mxu0 0.0
    %410 = vmatpush2.msra.mxu0 0.0
    %411 = vmatprep.subr.mxu0 0.0
    %412 = vmatpush2.msra.mxu0 0.0
    %413 = vmatprep.subr.mxu0 0.0
    %414 = vmatpush2.msra.mxu0 0.0
    %415 = vmatprep.subr.mxu0 0.0
    %416 = vmatpush2.msra.mxu0 0.0
    %417 = vmatprep.subr.mxu0 0.0
    %418 = vmatpush2.msra.mxu0 0.0
    %419 = vmatprep.subr.mxu0 0.0
    %420 = vmatpush2.msra.mxu0 0.0
    %421 = vmatprep.subr.mxu0 0.0
    %422 = vmatpush2.msra.mxu0 0.0
    %423 = vmatprep.subr.mxu0 0.0
    %424 = vmatpush2.msra.mxu0 0.0
    %425 = vmatprep.subr.mxu0 0.0
    %426 = vmatpush2.msra.mxu0 0.0
    %427 = vmatprep.mubr.f32.mxu0 0.0
    %428 = vmatmul.mubr.f32.gmra.mxu0 %v341
    %v429 = vpop.f32.mrf.mxu0
    %v430 = vadd.f32 %v362, %v429
    %v431 = vpop.f32.mrf.mxu0
    %432 = vdwg.mxu0
    %v433 = vsel %vm28, %v430, 0.0
    %434 = vadd.xlane.f32.xlu0 %v433
    %v435 = vpop.xlane.xlu0 %434
    %v436 = vrcp.pop 64.0
    %v437 = vmul.f32 %v435, %v436
    %v438 = vsub.f32 %v430, %v437
    %v439 = vsel %vm35, %v438, 0.0
    %v440 = vmul.f32 %v439, %v439
    %v441 = vsel %vm28, %v440, 0.0
    %442 = vadd.xlane.f32.xlu0 %v441
    %v443 = vpop.xlane.xlu0 %442
    %v444 = vmul.f32 %v443, %v436
    %v445 = vadd.f32 %v444, 1e-05
    %v446 = vrsqrt.pop %v445
    %v447 = vmul.f32 %v439, %v446
    %v448 = vld [vmem:[#allocation2 + $0xc] sm:$0x1]
    %v449 = vlaneseq
    %v450 = vshrl.u32 %v449, 7
    %v451 = vsub.s32 0, %v450
    %v452 = vrot.slane %v448, %v451
    %v453 = vmul.f32 %v447, %v452
    %v454 = vld [vmem:[#allocation2 + $0xd] sm:$0x1]
    %v455 = vlaneseq
    %v456 = vshrl.u32 %v455, 7
    %v457 = vsub.s32 0, %v456
    %v458 = vrot.slane %v454, %v457
    %v459 = vadd.f32 %v453, %v458
    %v460 = vtanh.pop %v459
    %vm461 = vcmp.lt.s32.totalorder %v26, 32
    %v462 = vsel %vm461, -1.0, 1.0
    %v463 = vsub.f32 %v58, %v460
    %v464 = vmul.f32 %v463, %v462
    %v465 = vadd.f32 %v464, %v271
    %vm466 = vcmp.eq.s32.totalorder %v26, 68
    %v467 = vsel %vm466, %v286, 0.0
    %v468 = vadd.f32 %v465, %v467
    %469 = vst [vmem:[%s2] sm:$0x3] %v468
    // Predicated region
    $region14: #{_forward_impl.1} parent=1 // pred_check
      _
    $region15: #{_forward_impl.1} parent=1 // pred_check_branch
      %471 = sbr.rel (0) target = $region17
    $region16: #{_forward_impl.1} parent=1 // pred_region
      _
    $region17: #{_forward_impl.1} parent=1 // pred_fallthru
      _
    // Predicated region
    $region18: #{_forward_impl.1} parent=1 // pred_check
      _
    $region19: #{_forward_impl.1} parent=1 // pred_check_branch
      %473 = sbr.rel (0) target = $region21
    $region20: #{_forward_impl.1} parent=1 // pred_region
      _
    $region21: #{_forward_impl.1} parent=1 // pred_fallthru
      _
    %474 = vsyncpa [#allocation3], 1

</llo_original>
